<compile_context>
chip_gen: v7x
topology: tpu7x:2x2x1
jax: 0.10.0
libtpu: 0.0.40
codegen_flags: <defaults>
</compile_context>

<pallas_src>
import jax
import jax.numpy as jnp
from jax.experimental import pallas as pl
from jax.experimental.pallas import tpu as pltpu

_LANE = 128
_SUBLANE = 8


def _round_up(n, m):
    return ((n + m - 1) // m) * m


def _choose_tile_m(B, block_m):
    """Batch tile size: multiple of 8, >=2 steps for large B, <=~10% padding."""
    B8 = _round_up(B, _SUBLANE)
    tm = min(block_m, B8)
    # v7x has 2 TensorCores: make sure large batches produce >= 2 grid steps
    # so the "parallel" grid axis can be sharded across them (harmless on
    # 1-TC v5e/v6e since tm stays >= 512 here).
    if B8 >= 1024:
        tm = min(tm, _round_up((B8 + 1) // 2, _SUBLANE))
    # Bound batch over-padding: padded rows cost full DMA + MXU + writeback.
    while tm > _SUBLANE and (_round_up(B8, tm) - B8) * 10 > B8:
        tm = max(_round_up(tm // 2, _SUBLANE), _SUBLANE)
    return max(tm, _SUBLANE)


def mlp_kernel(x_ref, w1_ref, b1_ref, w2_ref, b2_ref, o_ref):
    # Cast the f32 input tile to bf16 on the VPU (cheap, avoids a wrapper-side
    # padded/casted copy of x in HBM), then hidden matmul on the MXU with f32
    # accumulation.
    x = x_ref[...].astype(w1_ref.dtype)
    h = jnp.dot(x, w1_ref[...], preferred_element_type=jnp.float32)
    # Epilogue in f32: bias broadcast + LeakyReLU (negative_slope = 0.01,
    # the nn.LeakyReLU default).
    h = h + b1_ref[...]
    h = jnp.where(h > 0, h, 0.01 * h)
    # Second matmul: (tm, Ep) @ (Ep, K) -> f32, bias add, store (tm, K).
    out = jnp.dot(h.astype(w2_ref.dtype), w2_ref[...],
                  preferred_element_type=jnp.float32)
    o_ref[...] = (out + b2_ref[...]).astype(o_ref.dtype)


def prepare_params(w1, b1, w2, b2, *, compute_dtype=jnp.bfloat16):
    """Pad the hidden dim to a lane multiple and cast to the MXU dtype ONCE,
    outside the per-call hot path (weights/biases are grid-resident).

    w1: (C, E); b1: (1, E); w2: (E, K); b2: (1, K)  [ (in, out) layout ]
    """
    E = w1.shape[1]
    Ep = _round_up(E, _LANE)
    # Zero-padding is semantics-preserving: padded hidden lanes get h == 0
    # (and leaky_relu(0) == 0) and the padded W2 rows contribute 0.
    w1p = jnp.pad(w1, ((0, 0), (0, Ep - E))).astype(compute_dtype)
    b1p = jnp.pad(b1, ((0, 0), (0, Ep - E))).astype(jnp.float32)
    w2p = jnp.pad(w2, ((0, Ep - E), (0, 0))).astype(compute_dtype)
    b2p = b2.astype(jnp.float32)
    return w1p, b1p, w2p, b2p


def mlp_forward(x, params, *, block_m=1024):
    """x: (B, C) f32; params: output of prepare_params(). Returns (B, K) f32."""
    w1p, b1p, w2p, b2p = params
    B, C = x.shape
    Ep = w1p.shape[1]
    K = w2p.shape[1]

    tm = _choose_tile_m(B, block_m)
    Bp = _round_up(B, tm)

    # Only the batch dim is padded (feature dims C and K stay unpadded: the
    # last block dim equals the full array dim, which is legal and keeps HBM
    # traffic at the true row width).
    xp = jnp.pad(x, ((0, Bp - B), (0, 0))) if Bp != B else x

    grid = (Bp // tm,)

    out_padded = pl.pallas_call(
        mlp_kernel,
        out_shape=jax.ShapeDtypeStruct((Bp, K), x.dtype),
        grid_spec=pltpu.PrefetchScalarGridSpec(
            num_scalar_prefetch=0,
            grid=grid,
            in_specs=[
                # x streams per grid step: (tm, C), f32, cast in-kernel.
                pl.BlockSpec((tm, C), lambda i: (i, 0)),
                # Weights / biases: constant block index -> fetched once,
                # VMEM-resident across all grid steps.
                pl.BlockSpec((C, Ep), lambda i: (0, 0)),
                pl.BlockSpec((1, Ep), lambda i: (0, 0)),
                pl.BlockSpec((Ep, K), lambda i: (0, 0)),
                pl.BlockSpec((1, K), lambda i: (0, 0)),
            ],
            out_specs=pl.BlockSpec((tm, K), lambda i: (i, 0)),
        ),
        compiler_params=pltpu.CompilerParams(
            dimension_semantics=("parallel",),
        ),
    )(xp, w1p, b1p, w2p, b2p)

    return out_padded[:B] if Bp != B else out_padded


def init_params(key, num_concepts, num_classes, expand_dim=16, dtype=jnp.float32):
    # Deterministic init mimicking PyTorch nn.Linear default
    # (uniform +/- 1/sqrt(fan_in)); weights stored as (in, out).
    k1, k2, k3, k4 = jax.random.split(key, 4)
    bound1 = 1.0 / jnp.sqrt(num_concepts)
    bound2 = 1.0 / jnp.sqrt(expand_dim)
    w1 = jax.random.uniform(k1, (num_concepts, expand_dim), dtype, -bound1, bound1)
    b1 = jax.random.uniform(k2, (1, expand_dim), dtype, -bound1, bound1)
    w2 = jax.random.uniform(k3, (expand_dim, num_classes), dtype, -bound2, bound2)
    b2 = jax.random.uniform(k4, (1, num_classes), dtype, -bound2, bound2)
    return w1, b1, w2, b2


def _reference(x, w1, b1, w2, b2):
    # Pure-JAX reference using the same bf16-MXU-input / f32-accumulate recipe
    # as the kernel (see note at top re: quantization vs a pure-f32 module).
    xb = x.astype(jnp.bfloat16)
    w1b = w1.astype(jnp.bfloat16)
    w2b = w2.astype(jnp.bfloat16)
    h = jnp.dot(xb, w1b, preferred_element_type=jnp.float32) + b1
    h = jnp.where(h > 0, h, 0.01 * h)
    return jnp.dot(h.astype(jnp.bfloat16), w2b,
                   preferred_element_type=jnp.float32) + b2


if __name__ == "__main__":
    num_concepts = 32
    num_classes = 4
    expand_dim = 16

    key = jax.random.PRNGKey(0)
    kx, kp, kx2 = jax.random.split(key, 3)
    w1, b1, w2, b2 = init_params(kp, num_concepts, num_classes, expand_dim)
    params = prepare_params(w1, b1, w2, b2)

    # Small-batch check (single grid step).
    batch = 8
    x = jax.random.normal(kx, (batch, num_concepts), dtype=jnp.float32)
    out = jax.block_until_ready(mlp_forward(x, params))
    assert out.shape == (batch, num_classes)
    assert out.dtype == jnp.float32
    ref = _reference(x, w1, b1, w2, b2)
    assert jnp.allclose(out, ref, atol=1e-3, rtol=1e-3), (
        f"max abs err = {jnp.max(jnp.abs(out - ref))}")

    # Ragged-batch check (exercises batch padding / slicing).
    batch2 = 300
    x2 = jax.random.normal(kx2, (batch2, num_concepts), dtype=jnp.float32)
    out2 = jax.block_until_ready(mlp_forward(x2, params))
    assert out2.shape == (batch2, num_classes)
    ref2 = _reference(x2, w1, b1, w2, b2)
    assert jnp.allclose(out2, ref2, atol=1e-3, rtol=1e-3), (
        f"max abs err = {jnp.max(jnp.abs(out2 - ref2))}")

    print("KERNEL_OK")
</pallas_src>

<mosaic_0001>
module attributes {stable_mosaic.version = 11 : i64} {
  func.func @mlp_kernel(%arg0: i32, %arg1: memref<8x32xf32, #tpu.memory_space<vmem>>, %arg2: memref<32x128xbf16, #tpu.memory_space<vmem>>, %arg3: memref<1x128xf32, #tpu.memory_space<vmem>>, %arg4: memref<128x4xbf16, #tpu.memory_space<vmem>>, %arg5: memref<1x4xf32, #tpu.memory_space<vmem>>, %arg6: memref<8x4xf32, #tpu.memory_space<vmem>>) attributes {dimension_semantics = [#tpu.dimension_semantics<parallel>], iteration_bounds = array<i64: 1>, scalar_prefetch = 0 : i64, scratch_operands = 0 : i64, tpu.core_type = #tpu.core_type<tc>, window_params = [{transform_indices = @transform_0, window_bounds = array<i64: 8, 32>}, {pipeline_mode = #tpu.pipeline_mode<synchronous>, transform_indices = @transform_1, window_bounds = array<i64: 32, 128>}, {pipeline_mode = #tpu.pipeline_mode<synchronous>, transform_indices = @transform_2, window_bounds = array<i64: 1, 128>}, {pipeline_mode = #tpu.pipeline_mode<synchronous>, transform_indices = @transform_3, window_bounds = array<i64: 128, 4>}, {pipeline_mode = #tpu.pipeline_mode<synchronous>, transform_indices = @transform_4, window_bounds = array<i64: 1, 4>}, {transform_indices = @transform_5, window_bounds = array<i64: 8, 4>}]} {
    %c0 = arith.constant 0 : index
    %c0_0 = arith.constant 0 : index
    %0 = vector.load %arg1[%c0, %c0_0] : memref<8x32xf32, #tpu.memory_space<vmem>>, vector<8x32xf32>
    %1 = arith.truncf %0 : vector<8x32xf32> to vector<8x32xbf16>
    %c0_1 = arith.constant 0 : index
    %c0_2 = arith.constant 0 : index
    %2 = vector.load %arg2[%c0_1, %c0_2] : memref<32x128xbf16, #tpu.memory_space<vmem>>, vector<32x128xbf16>
    %cst = arith.constant dense<0.000000e+00> : vector<8x128xf32>
    %3 = tpu.matmul %1, %2, %cst {dimension_numbers = #tpu.dot_dimension_numbers<[1], [0], [0], [1], [0, 0, 1, 1], [], []>} : vector<8x32xbf16>, vector<32x128xbf16>, vector<8x128xf32> -> vector<8x128xf32>
    %c0_3 = arith.constant 0 : index
    %c0_4 = arith.constant 0 : index
    %4 = vector.load %arg3[%c0_3, %c0_4] : memref<1x128xf32, #tpu.memory_space<vmem>>, vector<1x128xf32>
    %5 = vector.broadcast %4 : vector<1x128xf32> to vector<8x128xf32>
    %6 = arith.addf %3, %5 : vector<8x128xf32>
    %cst_5 = arith.constant 0.000000e+00 : f32
    %7 = vector.broadcast %cst_5 : f32 to vector<8x128xf32>
    %8 = arith.cmpf ogt, %6, %7 : vector<8x128xf32>
    %cst_6 = arith.constant 0.00999999977 : f32
    %9 = vector.broadcast %cst_6 : f32 to vector<8x128xf32>
    %10 = arith.mulf %9, %6 : vector<8x128xf32>
    %11 = arith.select %8, %6, %10 : vector<8x128xi1>, vector<8x128xf32>
    %12 = arith.truncf %11 : vector<8x128xf32> to vector<8x128xbf16>
    %c0_7 = arith.constant 0 : index
    %c0_8 = arith.constant 0 : index
    %13 = vector.load %arg4[%c0_7, %c0_8] : memref<128x4xbf16, #tpu.memory_space<vmem>>, vector<128x4xbf16>
    %cst_9 = arith.constant dense<0.000000e+00> : vector<8x4xf32>
    %14 = tpu.matmul %12, %13, %cst_9 {dimension_numbers = #tpu.dot_dimension_numbers<[1], [0], [0], [1], [0, 0, 1, 1], [], []>} : vector<8x128xbf16>, vector<128x4xbf16>, vector<8x4xf32> -> vector<8x4xf32>
    %c0_10 = arith.constant 0 : index
    %c0_11 = arith.constant 0 : index
    %15 = vector.load %arg5[%c0_10, %c0_11] : memref<1x4xf32, #tpu.memory_space<vmem>>, vector<1x4xf32>
    %16 = vector.broadcast %15 : vector<1x4xf32> to vector<8x4xf32>
    %17 = arith.addf %14, %16 : vector<8x4xf32>
    %c0_12 = arith.constant 0 : index
    %c0_13 = arith.constant 0 : index
    %18 = vector.load %arg6[%c0_12, %c0_13] : memref<8x4xf32, #tpu.memory_space<vmem>>, vector<8x4xf32>
    tpu.vector_store %arg6[%c0_12, %c0_13], %17 {strides = array<i32>} : memref<8x4xf32, #tpu.memory_space<vmem>>, vector<8x4xf32>,
    return
  }
  func.func @transform_0(%arg0: i32) -> (i32, i32) {
    %c0_i32 = arith.constant 0 : i32
    %c0_i32_0 = arith.constant 0 : i32
    return %arg0, %c0_i32 : i32, i32
  }
  func.func @transform_1(%arg0: i32) -> (i32, i32) {
    %c0_i32 = arith.constant 0 : i32
    %c0_i32_0 = arith.constant 0 : i32
    %c0_i32_1 = arith.constant 0 : i32
    return %c0_i32, %c0_i32_0 : i32, i32
  }
  func.func @transform_2(%arg0: i32) -> (i32, i32) {
    %c0_i32 = arith.constant 0 : i32
    %c0_i32_0 = arith.constant 0 : i32
    %c0_i32_1 = arith.constant 0 : i32
    return %c0_i32, %c0_i32_0 : i32, i32
  }
  func.func @transform_3(%arg0: i32) -> (i32, i32) {
    %c0_i32 = arith.constant 0 : i32
    %c0_i32_0 = arith.constant 0 : i32
    %c0_i32_1 = arith.constant 0 : i32
    return %c0_i32, %c0_i32_0 : i32, i32
  }
  func.func @transform_4(%arg0: i32) -> (i32, i32) {
    %c0_i32 = arith.constant 0 : i32
    %c0_i32_0 = arith.constant 0 : i32
    %c0_i32_1 = arith.constant 0 : i32
    return %c0_i32, %c0_i32_0 : i32, i32
  }
  func.func @transform_5(%arg0: i32) -> (i32, i32) {
    %c0_i32 = arith.constant 0 : i32
    %c0_i32_0 = arith.constant 0 : i32
    return %arg0, %c0_i32 : i32, i32
  }
}

</mosaic_0001>

<llo_original>
// kernel: tpu_custom_call.1
$region0: #{tpu_custom_call.1}
  #allocation0 [shape = 'u32[]', space=smem, size = 0x4, offset = 0x4, fixed_abs, tag = 'smem constant byte address 0x4 - core index']
  #allocation1 [shape = 'u32[144,128]{1,0:T(1,128)}', space=vmem, size = 0x12000, scoped, tag = 'internal scratch']
  %s0 = inlined_call_operand.vmem [shape: f32[8,32], index: 0, kind: input, shape index: {}]
  %s1 = inlined_call_operand.vmem [shape: bf16[32,128], index: 1, kind: input, shape index: {}]
  %s2 = inlined_call_operand.vmem [shape: f32[1,128], index: 2, kind: input, shape index: {}]
  %s3 = inlined_call_operand.vmem [shape: bf16[128,4], index: 3, kind: input, shape index: {}]
  %s4 = inlined_call_operand.vmem [shape: f32[1,4], index: 4, kind: input, shape index: {}]
  %s5 = inlined_call_operand.vmem [shape: f32[8,4], index: 5, kind: output, shape index: {}]
  %s6 = sld [smem:[#allocation0]]
  $region30: #{tpu_custom_call.1} parent=0
    _
  %s8 = ssub.s32 1, %s6
  %s9 = scalar_select 0, %s8, %s6
  // Predicated region
  $region2: #{tpu_custom_call.1} parent=0 // pred_check
    _
  $region3: #{tpu_custom_call.1} parent=0 // pred_check_branch
    %11 = sbr.rel (0) target = $region5
  $region4: #{tpu_custom_call.1} parent=0 // pred_region
    _
  $region5: #{tpu_custom_call.1} parent=0 // pred_fallthru
    _
  // Predicated region
  $region6: #{tpu_custom_call.1} parent=0 // pred_check
    _
  $region7: #{tpu_custom_call.1} parent=0 // pred_check_branch
    %13 = sbr.rel (0) target = $region9
  $region8: #{tpu_custom_call.1} parent=0 // pred_region
    _
  $region9: #{tpu_custom_call.1} parent=0 // pred_fallthru
    _
  // Predicated region
  $region10: #{tpu_custom_call.1} parent=0 // pred_check
    _
  $region11: #{tpu_custom_call.1} parent=0 // pred_check_branch
    %15 = sbr.rel (0) target = $region13
  $region12: #{tpu_custom_call.1} parent=0 // pred_region
    _
  $region13: #{tpu_custom_call.1} parent=0 // pred_fallthru
    _
  // Predicated region
  $region14: #{tpu_custom_call.1} parent=0 // pred_check
    _
  $region15: #{tpu_custom_call.1} parent=0 // pred_check_branch
    %17 = sbr.rel (0) target = $region17
  $region16: #{tpu_custom_call.1} parent=0 // pred_region
    _
  $region17: #{tpu_custom_call.1} parent=0 // pred_fallthru
    _
  // Predicated region
  $region18: #{tpu_custom_call.1} parent=0 // pred_check
    _
  $region19: #{tpu_custom_call.1} parent=0 // pred_check_branch
    %19 = sbr.rel (0) target = $region21
  $region20: #{tpu_custom_call.1} parent=0 // pred_region
    _
  $region21: #{tpu_custom_call.1} parent=0 // pred_fallthru
    _
  %v21 = vld [vmem:[%s0] sm:$0xff]
  %v22 = vpack.c.bf16 %v21, %v21
  %v23 = vld [vmem:[%s1] sm:$0xf]
  %v24 = vld [vmem:[%s1 + $0x4] sm:$0xf]
  %v25 = vld [vmem:[%s1 + $0x8] sm:$0xf]
  %v26 = vld [vmem:[%s1 + $0xc] sm:$0xf]
  %v27 = vld [vmem:[%s2] sm:$0x1]
  %v29 = vlaneseq
  %v30 = vshrl.u32 %v29, 7
  %v31 = vsub.s32 0, %v30
  %v32 = vrot.slane %v27, %v31
  %v38 = vunpack.c.l.b16 %v23
  %v39 = vunpack.c.l.b16 %v24
  %v40 = vunpack.c.l.b16 %v25
  %v41 = vunpack.c.l.b16 %v26
  %v42 = vpack.c.b16 %v39, %v38
  %v43 = vpack.c.b16 %v41, %v40
  %vm46 = vcmask 261120
  %v48 = vsel %vm46, %v22, 0
  %50 = vmatprep.subr.bf16.mxu0 0
  %51 = vmatpush1.bf16.msra.mxu0 %v42
  %52 = vmatprep.subr.bf16.mxu0 0
  %53 = vmatpush1.bf16.msra.mxu0 %v43
  %54 = vmatprep.subr.bf16.mxu0 0
  %55 = vmatpush1.bf16.msra.mxu0 0
  %56 = vmatprep.subr.bf16.mxu0 0
  %57 = vmatpush1.bf16.msra.mxu0 0
  %58 = vmatprep.subr.bf16.mxu0 0
  %59 = vmatpush1.bf16.msra.mxu0 0
  %60 = vmatprep.subr.bf16.mxu0 0
  %61 = vmatpush1.bf16.msra.mxu0 0
  %62 = vmatprep.subr.bf16.mxu0 0
  %63 = vmatpush1.bf16.msra.mxu0 0
  %64 = vmatprep.subr.bf16.mxu0 0
  %65 = vmatpush1.bf16.msra.mxu0 0
  %66 = vmatprep.subr.bf16.mxu0 0
  %67 = vmatpush1.bf16.msra.mxu0 0
  %68 = vmatprep.subr.bf16.mxu0 0
  %69 = vmatpush1.bf16.msra.mxu0 0
  %70 = vmatprep.subr.bf16.mxu0 0
  %71 = vmatpush1.bf16.msra.mxu0 0
  %72 = vmatprep.subr.bf16.mxu0 0
  %73 = vmatpush1.bf16.msra.mxu0 0
  %74 = vmatprep.subr.bf16.mxu0 0
  %75 = vmatpush1.bf16.msra.mxu0 0
  %76 = vmatprep.subr.bf16.mxu0 0
  %77 = vmatpush1.bf16.msra.mxu0 0
  %78 = vmatprep.subr.bf16.mxu0 0
  %79 = vmatpush1.bf16.msra.mxu0 0
  %80 = vmatprep.subr.bf16.mxu0 0
  %81 = vmatpush1.bf16.msra.mxu0 0
  %82 = vmatprep.mubr.bf16.mxu0 0
  %83 = vmatmul.mubr.bf16.gmra.mrb[0].mxu0 %v48
  %v84 = vpop.f32.mrb[0].mxu0
  %v85 = vadd.f32 %v32, %v84
  %v86 = vpop.f32.mrb[0].mxu0
  %v87 = vpop.f32.mrb[0].mxu0
  %v88 = vpop.f32.mrb[0].mxu0
  %89 = vdwg.mxu0
  %vm90 = vcmp.gt.f32.partialorder %v85, 0.0
  %v91 = vmul.f32 %v85, 0.01
  %v92 = vsel %vm90, %v85, %v91
  %v93 = vpack.c.bf16 %v92, %v92
  %v94 = vld [vmem:[%s3] sm:$0xf]
  %v95 = vld [vmem:[%s3 + $0x4] sm:$0xf]
  %v96 = vld [vmem:[%s3 + $0x8] sm:$0xf]
  %v97 = vld [vmem:[%s3 + $0xc] sm:$0xf]
  %v98 = vld [vmem:[%s3 + $0x10] sm:$0xf]
  %v99 = vld [vmem:[%s3 + $0x14] sm:$0xf]
  %v100 = vld [vmem:[%s3 + $0x18] sm:$0xf]
  %v101 = vld [vmem:[%s3 + $0x1c] sm:$0xf]
  %v102 = vld [vmem:[%s3 + $0x20] sm:$0xf]
  %v103 = vld [vmem:[%s3 + $0x24] sm:$0xf]
  %v104 = vld [vmem:[%s3 + $0x28] sm:$0xf]
  %v105 = vld [vmem:[%s3 + $0x2c] sm:$0xf]
  %v106 = vld [vmem:[%s3 + $0x30] sm:$0xf]
  %v107 = vld [vmem:[%s3 + $0x34] sm:$0xf]
  %v108 = vld [vmem:[%s3 + $0x38] sm:$0xf]
  %v109 = vld [vmem:[%s3 + $0x3c] sm:$0xf]
  %v110 = vld [vmem:[%s4] sm:$0x1]
  %v112 = vlaneseq
  %v113 = vshrl.u32 %v112, 7
  %v114 = vsub.s32 0, %v113
  %v115 = vrot.slane %v110, %v114
  %v133 = vunpack.c.l.b16 %v94
  %v134 = vunpack.c.l.b16 %v95
  %v135 = vunpack.c.l.b16 %v96
  %v136 = vunpack.c.l.b16 %v97
  %v137 = vunpack.c.l.b16 %v98
  %v138 = vunpack.c.l.b16 %v99
  %v139 = vunpack.c.l.b16 %v100
  %v140 = vunpack.c.l.b16 %v101
  %v141 = vunpack.c.l.b16 %v102
  %v142 = vunpack.c.l.b16 %v103
  %v143 = vunpack.c.l.b16 %v104
  %v144 = vunpack.c.l.b16 %v105
  %v145 = vunpack.c.l.b16 %v106
  %v146 = vunpack.c.l.b16 %v107
  %v147 = vunpack.c.l.b16 %v108
  %v148 = vunpack.c.l.b16 %v109
  %v149 = vpack.c.b16 %v134, %v133
  %v150 = vpack.c.b16 %v136, %v135
  %v151 = vpack.c.b16 %v138, %v137
  %v152 = vpack.c.b16 %v140, %v139
  %v153 = vpack.c.b16 %v142, %v141
  %v154 = vpack.c.b16 %v144, %v143
  %v155 = vpack.c.b16 %v146, %v145
  %v156 = vpack.c.b16 %v148, %v147
  %165 = vmatprep.subr.bf16.mxu0 0
  %166 = vmatpush1.bf16.msra.mxu0 %v149
  %167 = vmatprep.subr.bf16.mxu0 0
  %168 = vmatpush1.bf16.msra.mxu0 %v150
  %169 = vmatprep.subr.bf16.mxu0 0
  %170 = vmatpush1.bf16.msra.mxu0 %v151
  %171 = vmatprep.subr.bf16.mxu0 0
  %172 = vmatpush1.bf16.msra.mxu0 %v152
  %173 = vmatprep.subr.bf16.mxu0 0
  %174 = vmatpush1.bf16.msra.mxu0 %v153
  %175 = vmatprep.subr.bf16.mxu0 0
  %176 = vmatpush1.bf16.msra.mxu0 %v154
  %177 = vmatprep.subr.bf16.mxu0 0
  %178 = vmatpush1.bf16.msra.mxu0 %v155
  %179 = vmatprep.subr.bf16.mxu0 0
  %180 = vmatpush1.bf16.msra.mxu0 %v156
  %181 = vmatprep.subr.bf16.mxu0 0
  %182 = vmatpush1.bf16.msra.mxu0 0
  %183 = vmatprep.subr.bf16.mxu0 0
  %184 = vmatpush1.bf16.msra.mxu0 0
  %185 = vmatprep.subr.bf16.mxu0 0
  %186 = vmatpush1.bf16.msra.mxu0 0
  %187 = vmatprep.subr.bf16.mxu0 0
  %188 = vmatpush1.bf16.msra.mxu0 0
  %189 = vmatprep.subr.bf16.mxu0 0
  %190 = vmatpush1.bf16.msra.mxu0 0
  %191 = vmatprep.subr.bf16.mxu0 0
  %192 = vmatpush1.bf16.msra.mxu0 0
  %193 = vmatprep.subr.bf16.mxu0 0
  %194 = vmatpush1.bf16.msra.mxu0 0
  %195 = vmatprep.subr.bf16.mxu0 0
  %196 = vmatpush1.bf16.msra.mxu0 0
  %197 = vmatprep.mubr.bf16.mxu0 0
  %198 = vmatmul.mubr.bf16.gmra.mrb[0].mxu0 %v93
  %v199 = vpop.f32.mrb[0].mxu0
  %v200 = vadd.f32 %v115, %v199
  %v201 = vpop.f32.mrb[0].mxu0
  %v202 = vpop.f32.mrb[0].mxu0
  %v203 = vpop.f32.mrb[0].mxu0
  %204 = vdwg.mxu0
  %vm205 = vcmask 31744
  %206 = vst.msk [vmem:[%s5] sm:$0xff] %vm205, %v200
  // Predicated region
  $region22: #{tpu_custom_call.1} parent=0 // pred_check
    _
  $region23: #{tpu_custom_call.1} parent=0 // pred_check_branch
    %208 = sbr.rel (0) target = $region25
  $region24: #{tpu_custom_call.1} parent=0 // pred_region
    _
  $region25: #{tpu_custom_call.1} parent=0 // pred_fallthru
    _
  // Predicated region
  $region26: #{tpu_custom_call.1} parent=0 // pred_check
    _
  $region27: #{tpu_custom_call.1} parent=0 // pred_check_branch
    %210 = sbr.rel (0) target = $region29
  $region28: #{tpu_custom_call.1} parent=0 // pred_region
    _
  $region29: #{tpu_custom_call.1} parent=0 // pred_fallthru
    _

</llo_original>
